<compile_context>
chip_gen: v7x
topology: tpu7x:2x2x1
jax: 0.10.0
libtpu: 0.0.40
codegen_flags: <defaults>
</compile_context>

<pallas_src>
import jax
import jax.numpy as jnp
from jax.experimental import pallas as pl
from jax.experimental.pallas import tpu as pltpu

HIDDEN = 4


def mlp_kernel(x_ref, p1_ref, p2_ref, o_ref):
    x = x_ref[...]                      # (TB, IN) f32
    p1 = p1_ref[...]                    # (IN+1, HIDDEN): rows [0:IN]=W1, row IN=b1
    p2 = p2_ref[...]                    # (HIDDEN+1, OUT_PAD): rows [0:H]=W2, row H=b2

    w1 = p1[:-1, :]                     # (IN, HIDDEN)
    b1 = p1[-1:, :]                     # (1, HIDDEN)
    w2 = p2[:-1, :]                     # (HIDDEN, OUT_PAD)
    b2 = p2[-1:, :]                     # (1, OUT_PAD)

    # fc1 + ReLU (MXU dot, VPU add/max in f32)
    h = jnp.dot(x, w1, preferred_element_type=jnp.float32) + b1
    h = jnp.maximum(h, 0.0)
    # fc2
    y = jnp.dot(h, w2, preferred_element_type=jnp.float32) + b2
    o_ref[...] = y.astype(o_ref.dtype)


def _round_up(n, m):
    return ((n + m - 1) // m) * m


def simple_nn_forward(x, w1, b1, w2, b2, *, tb=1024):
    """x: [B, IN] f32, w1: [IN, 4], b1: [1, 4], w2: [4, OUT], b2: [1, OUT]."""
    B, IN = x.shape
    OUT = w2.shape[1]

    # Lane-dense output: pad OUT to a multiple of 128 (zero columns, sliced off later).
    OUT_PAD = _round_up(max(OUT, 1), 128)

    # Pack params into two resident VMEM arrays (3 input DMAs instead of 5).
    p1 = jnp.concatenate([w1, b1], axis=0)                          # (IN+1, HIDDEN)
    w2p = jnp.pad(w2, ((0, 0), (0, OUT_PAD - OUT)))
    b2p = jnp.pad(b2, ((0, 0), (0, OUT_PAD - OUT)))
    p2 = jnp.concatenate([w2p, b2p], axis=0)                        # (HIDDEN+1, OUT_PAD)

    # Batch tiling: biggest useful tile, sublane-aligned (multiple of 8).
    TB = min(tb, _round_up(B, 8))
    B_pad = _round_up(B, TB)
    if B_pad != B:
        x = jnp.pad(x, ((0, B_pad - B), (0, 0)))
    grid = (B_pad // TB,)

    out = pl.pallas_call(
        mlp_kernel,
        out_shape=jax.ShapeDtypeStruct((B_pad, OUT_PAD), jnp.float32),
        grid=grid,
        in_specs=[
            pl.BlockSpec((TB, IN), lambda i: (i, 0)),        # x: one tile per step
            pl.BlockSpec(p1.shape, lambda i: (0, 0)),        # params resident in VMEM
            pl.BlockSpec(p2.shape, lambda i: (0, 0)),
        ],
        out_specs=pl.BlockSpec((TB, OUT_PAD), lambda i: (i, 0)),
        compiler_params=pltpu.CompilerParams(
            dimension_semantics=("parallel",),
        ),
    )(x, p1, p2)

    return out[:B, :OUT]


def init_params(key, input_size, output_size):
    """Deterministic init matching nn.Linear shapes (weights stored transposed)."""
    k1, k2, k3, k4 = jax.random.split(key, 4)
    # PyTorch Linear: weight [out, in], bias [out]. We store W.T = [in, out].
    bound1 = 1.0 / (input_size ** 0.5)
    w1 = jax.random.uniform(k1, (input_size, HIDDEN), jnp.float32, -bound1, bound1)
    b1 = jax.random.uniform(k2, (1, HIDDEN), jnp.float32, -bound1, bound1)
    bound2 = 1.0 / (HIDDEN ** 0.5)
    w2 = jax.random.uniform(k3, (HIDDEN, output_size), jnp.float32, -bound2, bound2)
    b2 = jax.random.uniform(k4, (1, output_size), jnp.float32, -bound2, bound2)
    return w1, b1, w2, b2


if __name__ == "__main__":
    key = jax.random.PRNGKey(0)
    kx, kp = jax.random.split(key)

    batch = 8
    input_size = 32
    output_size = 8

    x = jax.random.normal(kx, (batch, input_size), jnp.float32)
    w1, b1, w2, b2 = init_params(kp, input_size, output_size)

    out = simple_nn_forward(x, w1, b1, w2, b2)
    out = jax.block_until_ready(out)

    # Pure-JAX reference check of the fused kernel.
    ref = jnp.maximum(x @ w1 + b1, 0.0) @ w2 + b2
    assert out.shape == (batch, output_size)
    assert jnp.allclose(out, ref, atol=1e-5, rtol=1e-5)

    # Also exercise a batch-tiled / padded case (non-multiple of the tile size).
    big_b = 1000
    xb = jax.random.normal(kx, (big_b, input_size), jnp.float32)
    out_b = jax.block_until_ready(simple_nn_forward(xb, w1, b1, w2, b2, tb=512))
    ref_b = jnp.maximum(xb @ w1 + b1, 0.0) @ w2 + b2
    assert out_b.shape == (big_b, output_size)
    assert jnp.allclose(out_b, ref_b, atol=1e-5, rtol=1e-5)

    print("KERNEL_OK")
</pallas_src>

<mosaic_0001>
module attributes {stable_mosaic.version = 11 : i64} {
  func.func @mlp_kernel(%arg0: i32, %arg1: memref<8x32xf32, #tpu.memory_space<vmem>>, %arg2: memref<33x4xf32, #tpu.memory_space<vmem>>, %arg3: memref<5x128xf32, #tpu.memory_space<vmem>>, %arg4: memref<8x128xf32, #tpu.memory_space<vmem>>) attributes {dimension_semantics = [#tpu.dimension_semantics<parallel>], iteration_bounds = array<i64: 1>, scalar_prefetch = 0 : i64, scratch_operands = 0 : i64, tpu.core_type = #tpu.core_type<tc>, window_params = [{transform_indices = @transform_0, window_bounds = array<i64: 8, 32>}, {pipeline_mode = #tpu.pipeline_mode<synchronous>, transform_indices = @transform_1, window_bounds = array<i64: 33, 4>}, {pipeline_mode = #tpu.pipeline_mode<synchronous>, transform_indices = @transform_2, window_bounds = array<i64: 5, 128>}, {transform_indices = @transform_3, window_bounds = array<i64: 8, 128>}]} {
    %c0 = arith.constant 0 : index
    %c0_0 = arith.constant 0 : index
    %0 = vector.load %arg1[%c0, %c0_0] : memref<8x32xf32, #tpu.memory_space<vmem>>, vector<8x32xf32>
    %c0_1 = arith.constant 0 : index
    %c0_2 = arith.constant 0 : index
    %1 = vector.load %arg2[%c0_1, %c0_2] : memref<33x4xf32, #tpu.memory_space<vmem>>, vector<33x4xf32>
    %c0_3 = arith.constant 0 : index
    %c0_4 = arith.constant 0 : index
    %2 = vector.load %arg3[%c0_3, %c0_4] : memref<5x128xf32, #tpu.memory_space<vmem>>, vector<5x128xf32>
    %3 = vector.extract_strided_slice %1 {offsets = [0, 0], sizes = [32, 4], strides = [1, 1]} : vector<33x4xf32> to vector<32x4xf32>
    %4 = vector.extract_strided_slice %1 {offsets = [32, 0], sizes = [1, 4], strides = [1, 1]} : vector<33x4xf32> to vector<1x4xf32>
    %5 = vector.extract_strided_slice %2 {offsets = [0, 0], sizes = [4, 128], strides = [1, 1]} : vector<5x128xf32> to vector<4x128xf32>
    %6 = vector.extract_strided_slice %2 {offsets = [4, 0], sizes = [1, 128], strides = [1, 1]} : vector<5x128xf32> to vector<1x128xf32>
    %cst = arith.constant dense<0.000000e+00> : vector<8x4xf32>
    %7 = tpu.matmul %0, %3, %cst {dimension_numbers = #tpu.dot_dimension_numbers<[1], [0], [0], [1], [0, 0, 1, 1], [], []>} : vector<8x32xf32>, vector<32x4xf32>, vector<8x4xf32> -> vector<8x4xf32>
    %8 = vector.broadcast %4 : vector<1x4xf32> to vector<8x4xf32>
    %9 = arith.addf %7, %8 : vector<8x4xf32>
    %cst_5 = arith.constant 0.000000e+00 : f32
    %10 = vector.broadcast %cst_5 : f32 to vector<8x4xf32>
    %11 = arith.maximumf %9, %10 : vector<8x4xf32>
    %cst_6 = arith.constant dense<0.000000e+00> : vector<8x128xf32>
    %12 = tpu.matmul %11, %5, %cst_6 {dimension_numbers = #tpu.dot_dimension_numbers<[1], [0], [0], [1], [0, 0, 1, 1], [], []>} : vector<8x4xf32>, vector<4x128xf32>, vector<8x128xf32> -> vector<8x128xf32>
    %13 = vector.broadcast %6 : vector<1x128xf32> to vector<8x128xf32>
    %14 = arith.addf %12, %13 : vector<8x128xf32>
    %c0_7 = arith.constant 0 : index
    %c0_8 = arith.constant 0 : index
    %15 = vector.load %arg4[%c0_7, %c0_8] : memref<8x128xf32, #tpu.memory_space<vmem>>, vector<8x128xf32>
    tpu.vector_store %arg4[%c0_7, %c0_8], %14 {strides = array<i32>} : memref<8x128xf32, #tpu.memory_space<vmem>>, vector<8x128xf32>,
    return
  }
  func.func @transform_0(%arg0: i32) -> (i32, i32) {
    %c0_i32 = arith.constant 0 : i32
    %c0_i32_0 = arith.constant 0 : i32
    return %arg0, %c0_i32 : i32, i32
  }
  func.func @transform_1(%arg0: i32) -> (i32, i32) {
    %c0_i32 = arith.constant 0 : i32
    %c0_i32_0 = arith.constant 0 : i32
    %c0_i32_1 = arith.constant 0 : i32
    return %c0_i32, %c0_i32_0 : i32, i32
  }
  func.func @transform_2(%arg0: i32) -> (i32, i32) {
    %c0_i32 = arith.constant 0 : i32
    %c0_i32_0 = arith.constant 0 : i32
    %c0_i32_1 = arith.constant 0 : i32
    return %c0_i32, %c0_i32_0 : i32, i32
  }
  func.func @transform_3(%arg0: i32) -> (i32, i32) {
    %c0_i32 = arith.constant 0 : i32
    %c0_i32_0 = arith.constant 0 : i32
    return %arg0, %c0_i32 : i32, i32
  }
}

</mosaic_0001>

<llo_original>
// kernel: tpu_custom_call.1
$region0: #{tpu_custom_call.1}
  #allocation0 [shape = 'u32[]', space=smem, size = 0x4, offset = 0x4, fixed_abs, tag = 'smem constant byte address 0x4 - core index']
  #allocation1 [shape = 'u32[144,128]{1,0:T(1,128)}', space=vmem, size = 0x12000, scoped, tag = 'internal scratch']
  %s0 = inlined_call_operand.vmem [shape: f32[8,32], index: 0, kind: input, shape index: {}]
  %s1 = inlined_call_operand.vmem [shape: f32[33,4], index: 1, kind: input, shape index: {}]
  %s2 = inlined_call_operand.vmem [shape: f32[5,128], index: 2, kind: input, shape index: {}]
  %s3 = inlined_call_operand.hbm [shape: f32[8,128], index: 3, kind: output, shape index: {}]
  %s4 = sld [smem:[#allocation0]]
  $region22: #{tpu_custom_call.1} parent=0
    _
  %s6 = ssub.s32 1, %s4
  %s7 = scalar_select 0, %s6, %s4
  $region1: #{tpu_custom_call.1} parent=0
    #allocation2 [shape = 'u8[4096]{0}', space=vmem, size = 0x1000, scoped, tag = 'output window, operand 0, single buffered']
    #allocation3 [shape = 's32[1]{0}', space=sflag, size = 0x4, scoped, tag = 'scoped memory for tpu_custom_call.1']
    %8 = vsyncpa [#allocation3], 0
    // Predicated region
    $region2: #{tpu_custom_call.1} parent=1 // pred_check
      _
    $region3: #{tpu_custom_call.1} parent=1 // pred_check_branch
      %10 = sbr.rel (0) target = $region5
    $region4: #{tpu_custom_call.1} parent=1 // pred_region
      _
    $region5: #{tpu_custom_call.1} parent=1 // pred_fallthru
      _
    // Predicated region
    $region6: #{tpu_custom_call.1} parent=1 // pred_check
      _
    $region7: #{tpu_custom_call.1} parent=1 // pred_check_branch
      %12 = sbr.rel (0) target = $region9
    $region8: #{tpu_custom_call.1} parent=1 // pred_region
      _
    $region9: #{tpu_custom_call.1} parent=1 // pred_fallthru
      _
    // Predicated region
    $region10: #{tpu_custom_call.1} parent=1 // pred_check
      _
    $region11: #{tpu_custom_call.1} parent=1 // pred_check_branch
      %14 = sbr.rel (0) target = $region13
    $region12: #{tpu_custom_call.1} parent=1 // pred_region
      _
    $region13: #{tpu_custom_call.1} parent=1 // pred_fallthru
      _
    %v15 = vld [vmem:[%s0] sm:$0xff]
    %v16 = vld [vmem:[%s1] sm:$0xff]
    %v17 = vld [vmem:[%s1 + $0x8] sm:$0xff]
    %v18 = vld [vmem:[%s1 + $0x10] sm:$0xff]
    %v19 = vld [vmem:[%s1 + $0x18] sm:$0xff]
    %v20 = vld [vmem:[%s1 + $0x20] sm:$0x1]
    %v21 = vld [vmem:[%s2] sm:$0x1f]
    %v22 = vlaneseq
    %v23 = vshrl.u32 %v22, 7
    %v24 = vsub.s32 0, %v23
    %v25 = vrot.slane %v20, %v24
    %vm26 = vcmask 261120
    %v28 = vsel %vm26, %v15, 0
    %30 = vmatprep.subr.mxu0 0.0
    %31 = vmatpush1.msra.mxu0 %v16
    %32 = vmatprep.subr.mxu0 0.0
    %33 = vmatpush1.msra.mxu0 %v17
    %34 = vmatprep.subr.mxu0 0.0
    %35 = vmatpush1.msra.mxu0 %v18
    %36 = vmatprep.subr.mxu0 0.0
    %37 = vmatpush1.msra.mxu0 %v19
    %38 = vmatprep.subr.mxu0 0.0
    %39 = vmatpush1.msra.mxu0 0.0
    %40 = vmatprep.subr.mxu0 0.0
    %41 = vmatpush1.msra.mxu0 0.0
    %42 = vmatprep.subr.mxu0 0.0
    %43 = vmatpush1.msra.mxu0 0.0
    %44 = vmatprep.subr.mxu0 0.0
    %45 = vmatpush1.msra.mxu0 0.0
    %46 = vmatprep.subr.mxu0 0.0
    %47 = vmatpush1.msra.mxu0 0.0
    %48 = vmatprep.subr.mxu0 0.0
    %49 = vmatpush1.msra.mxu0 0.0
    %50 = vmatprep.subr.mxu0 0.0
    %51 = vmatpush1.msra.mxu0 0.0
    %52 = vmatprep.subr.mxu0 0.0
    %53 = vmatpush1.msra.mxu0 0.0
    %54 = vmatprep.subr.mxu0 0.0
    %55 = vmatpush1.msra.mxu0 0.0
    %56 = vmatprep.subr.mxu0 0.0
    %57 = vmatpush1.msra.mxu0 0.0
    %58 = vmatprep.subr.mxu0 0.0
    %59 = vmatpush1.msra.mxu0 0.0
    %60 = vmatprep.subr.mxu0 0.0
    %61 = vmatpush1.msra.mxu0 0.0
    %62 = vmatprep.subr.mxu0 0.0
    %63 = vmatpush1.msra.mxu0 0.0
    %64 = vmatprep.subr.mxu0 0.0
    %65 = vmatpush1.msra.mxu0 0.0
    %66 = vmatprep.subr.mxu0 0.0
    %67 = vmatpush1.msra.mxu0 0.0
    %68 = vmatprep.subr.mxu0 0.0
    %69 = vmatpush1.msra.mxu0 0.0
    %70 = vmatprep.subr.mxu0 0.0
    %71 = vmatpush1.msra.mxu0 0.0
    %72 = vmatprep.subr.mxu0 0.0
    %73 = vmatpush1.msra.mxu0 0.0
    %74 = vmatprep.subr.mxu0 0.0
    %75 = vmatpush1.msra.mxu0 0.0
    %76 = vmatprep.subr.mxu0 0.0
    %77 = vmatpush1.msra.mxu0 0.0
    %78 = vmatprep.subr.mxu0 0.0
    %79 = vmatpush1.msra.mxu0 0.0
    %80 = vmatprep.subr.mxu0 0.0
    %81 = vmatpush1.msra.mxu0 0.0
    %82 = vmatprep.subr.mxu0 0.0
    %83 = vmatpush1.msra.mxu0 0.0
    %84 = vmatprep.subr.mxu0 0.0
    %85 = vmatpush1.msra.mxu0 0.0
    %86 = vmatprep.subr.mxu0 0.0
    %87 = vmatpush1.msra.mxu0 0.0
    %88 = vmatprep.subr.mxu0 0.0
    %89 = vmatpush1.msra.mxu0 0.0
    %90 = vmatprep.subr.mxu0 0.0
    %91 = vmatpush1.msra.mxu0 0.0
    %92 = vmatprep.subr.mxu0 0.0
    %93 = vmatpush1.msra.mxu0 0.0
    %94 = vmatprep.mubr.f32.mxu0 0.0
    %95 = vmatmul.mubr.f32.gmra.mrb[0].mxu0 %v28
    %v96 = vpop.f32.mrb[0].mxu0
    %v97 = vadd.f32 %v25, %v96
    %v98 = vpop.f32.mrb[0].mxu0
    %99 = vdwg.mxu0
    %v100 = vmax.f32 %v97, 0.0
    %v101 = vlaneseq
    %v102 = vshrl.u32 %v101, 7
    %v103 = vsub.s32 4, %v102
    %v104 = vrot.slane %v21, %v103
    %vm105 = vcmask 31744
    %v107 = vsel %vm105, %v100, 0
    %vm109 = vcmask 1043456
    %v111 = vsel %vm109, %v21, 0
    %113 = vmatprep.subr.mxu0 0.0
    %114 = vmatpush1.msra.mxu0 %v111
    %115 = vmatprep.subr.mxu0 0.0
    %116 = vmatpush1.msra.mxu0 0.0
    %117 = vmatprep.subr.mxu0 0.0
    %118 = vmatpush1.msra.mxu0 0.0
    %119 = vmatprep.subr.mxu0 0.0
    %120 = vmatpush1.msra.mxu0 0.0
    %121 = vmatprep.subr.mxu0 0.0
    %122 = vmatpush1.msra.mxu0 0.0
    %123 = vmatprep.subr.mxu0 0.0
    %124 = vmatpush1.msra.mxu0 0.0
    %125 = vmatprep.subr.mxu0 0.0
    %126 = vmatpush1.msra.mxu0 0.0
    %127 = vmatprep.subr.mxu0 0.0
    %128 = vmatpush1.msra.mxu0 0.0
    %129 = vmatprep.subr.mxu0 0.0
    %130 = vmatpush1.msra.mxu0 0.0
    %131 = vmatprep.subr.mxu0 0.0
    %132 = vmatpush1.msra.mxu0 0.0
    %133 = vmatprep.subr.mxu0 0.0
    %134 = vmatpush1.msra.mxu0 0.0
    %135 = vmatprep.subr.mxu0 0.0
    %136 = vmatpush1.msra.mxu0 0.0
    %137 = vmatprep.subr.mxu0 0.0
    %138 = vmatpush1.msra.mxu0 0.0
    %139 = vmatprep.subr.mxu0 0.0
    %140 = vmatpush1.msra.mxu0 0.0
    %141 = vmatprep.subr.mxu0 0.0
    %142 = vmatpush1.msra.mxu0 0.0
    %143 = vmatprep.subr.mxu0 0.0
    %144 = vmatpush1.msra.mxu0 0.0
    %145 = vmatprep.subr.mxu0 0.0
    %146 = vmatpush1.msra.mxu0 0.0
    %147 = vmatprep.subr.mxu0 0.0
    %148 = vmatpush1.msra.mxu0 0.0
    %149 = vmatprep.subr.mxu0 0.0
    %150 = vmatpush1.msra.mxu0 0.0
    %151 = vmatprep.subr.mxu0 0.0
    %152 = vmatpush1.msra.mxu0 0.0
    %153 = vmatprep.subr.mxu0 0.0
    %154 = vmatpush1.msra.mxu0 0.0
    %155 = vmatprep.subr.mxu0 0.0
    %156 = vmatpush1.msra.mxu0 0.0
    %157 = vmatprep.subr.mxu0 0.0
    %158 = vmatpush1.msra.mxu0 0.0
    %159 = vmatprep.subr.mxu0 0.0
    %160 = vmatpush1.msra.mxu0 0.0
    %161 = vmatprep.subr.mxu0 0.0
    %162 = vmatpush1.msra.mxu0 0.0
    %163 = vmatprep.subr.mxu0 0.0
    %164 = vmatpush1.msra.mxu0 0.0
    %165 = vmatprep.subr.mxu0 0.0
    %166 = vmatpush1.msra.mxu0 0.0
    %167 = vmatprep.subr.mxu0 0.0
    %168 = vmatpush1.msra.mxu0 0.0
    %169 = vmatprep.subr.mxu0 0.0
    %170 = vmatpush1.msra.mxu0 0.0
    %171 = vmatprep.subr.mxu0 0.0
    %172 = vmatpush1.msra.mxu0 0.0
    %173 = vmatprep.subr.mxu0 0.0
    %174 = vmatpush1.msra.mxu0 0.0
    %175 = vmatprep.subr.mxu0 0.0
    %176 = vmatpush1.msra.mxu0 0.0
    %177 = vmatprep.mubr.f32.mxu0 0.0
    %178 = vmatmul.mubr.f32.gmra.mrb[0].mxu0 %v107
    %v179 = vpop.f32.mrb[0].mxu0
    %v180 = vadd.f32 %v104, %v179
    %v181 = vpop.f32.mrb[0].mxu0
    %182 = vdwg.mxu0
    %183 = vst [vmem:[#allocation2] sm:$0xff] %v180
    // Predicated region
    $region14: #{tpu_custom_call.1} parent=1 // pred_check
      _
    $region15: #{tpu_custom_call.1} parent=1 // pred_check_branch
      %185 = sbr.rel (0) target = $region17
    $region16: #{tpu_custom_call.1} parent=1 // pred_region
      %s187 = ssub.s32 128, 128
      %188 = vsyncadd [#allocation3], %s187
      %s190 = sshll.u32 [#allocation2], 4
      %s191 = int_to_ptr.vmem [resolvable:$true] %s190
      %193 = dma.vmem_to_hbm [thread:$0]  %s191, 128, %s3, [#allocation3]
    $region17: #{tpu_custom_call.1} parent=1 // pred_fallthru
      _
    // Predicated region
    $region18: #{tpu_custom_call.1} parent=1 // pred_check
      _
    $region19: #{tpu_custom_call.1} parent=1 // pred_check_branch
      %195 = sbr.rel (0) target = $region21
    $region20: #{tpu_custom_call.1} parent=1 // pred_region
      %196 = dma.done [#allocation3], 128
    $region21: #{tpu_custom_call.1} parent=1 // pred_fallthru
      _
    %197 = vsyncpa [#allocation3], 1

</llo_original>
